<compile_context>
chip_gen: v5e
topology: v5e:2x2
jax: 0.10.0
libtpu: 0.0.40
codegen_flags: <defaults>
</compile_context>

<pallas_src>
import functools
import math

import jax
import jax.numpy as jnp
from jax import lax
from jax.experimental import pallas as pl
from jax.experimental.pallas import tpu as pltpu

_LANE = 128          # lane width  (last-dim padding)
_SUBLANE = 8         # sublane width
_MIN_ROWS = 16       # smallest row bucket; keeps each Box-Muller half 8-aligned
_MAX_TILE_ROWS = 512 # row-tile size for the 1-D grid

_ON_TPU = jax.devices()[0].platform == "tpu"


def _round_up(n: int, m: int) -> int:
    return ((n + m - 1) // m) * m


def _mix(t):
    """lowbias32-style integer hash (single round, pure VPU ops)."""
    t = t ^ (t >> 16)
    t = t * jnp.uint32(0x7FEB352D)
    t = t ^ (t >> 15)
    t = t * jnp.uint32(0x846CA68B)
    t = t ^ (t >> 16)
    return t


def _bits_to_unit(bits_u32):
    """Exponent-bit trick: f in [1,2)  ->  u = 2 - f in (0, 1]  (log/angle safe)."""
    fb = (bits_u32 >> 9) | jnp.uint32(0x3F800000)
    f = lax.bitcast_convert_type(fb, jnp.float32)
    return jnp.float32(2.0) - f


def _randn_kernel(seed_ref, out_ref, *, half_rows: int, cols: int, use_hw_prng: bool):
    """Fill the (2*half_rows, cols) tile with N(0,1) f32 via Box-Muller (both branches)."""
    i = pl.program_id(0)

    if use_hw_prng:
        # Hardware PRNG: per-tile reseed keeps streams distinct across the grid.
        pltpu.prng_seed(seed_ref[0] + i * jnp.int32(7919))
        raw1 = pltpu.prng_random_bits((half_rows, cols))
        raw2 = pltpu.prng_random_bits((half_rows, cols))
        if raw1.dtype != jnp.uint32:
            raw1 = lax.bitcast_convert_type(raw1, jnp.uint32)
            raw2 = lax.bitcast_convert_type(raw2, jnp.uint32)
        b1, b2 = raw1, raw2
    else:
        # Counter-hash fallback (interpret mode / non-TPU backends).
        r = lax.broadcasted_iota(jnp.int32, (half_rows, cols), 0)
        c = lax.broadcasted_iota(jnp.int32, (half_rows, cols), 1)
        ctr = ((i * half_rows + r) * cols + c).astype(jnp.uint32)
        salt = seed_ref[0].astype(jnp.uint32) * jnp.uint32(0x9E3779B9)
        b1 = _mix(ctr + salt)
        b2 = _mix((ctr ^ jnp.uint32(0x5A5A5A5A)) + salt)

    u1 = _bits_to_unit(b1)   # (0, 1]
    u2 = _bits_to_unit(b2)   # (0, 1]

    # Box-Muller, both branches: log/sqrt shared across two outputs (EUP-bound path).
    radius = jnp.sqrt(jnp.float32(-2.0) * jnp.log(u1))
    theta = jnp.float32(2.0 * math.pi) * u2
    out_ref[:half_rows, :] = radius * jnp.cos(theta)
    out_ref[half_rows:, :] = radius * jnp.sin(theta)


@functools.lru_cache(maxsize=None)
def _build_randn(rows: int, cols: int):
    """One compiled kernel per (rows, cols) bucket; the seed is a runtime arg."""
    tr = min(rows, _MAX_TILE_ROWS)
    assert rows % tr == 0 and tr % (2 * _SUBLANE) == 0 and cols % _LANE == 0

    kernel = functools.partial(
        _randn_kernel, half_rows=tr // 2, cols=cols, use_hw_prng=_ON_TPU)

    fn = pl.pallas_call(
        kernel,
        out_shape=jax.ShapeDtypeStruct((rows, cols), jnp.float32),
        grid_spec=pltpu.PrefetchScalarGridSpec(
            num_scalar_prefetch=1,                 # seed lands in SMEM
            grid=(rows // tr,),
            in_specs=[],
            out_specs=pl.BlockSpec((tr, cols), lambda i, seed: (i, 0)),
        ),
        compiler_params=pltpu.CompilerParams(
            dimension_semantics=("parallel",),     # 2-TC sharding on v7x; no-op v5e/v6e
        ),
    )
    return jax.jit(fn)


class XGBoostClassifierPallas:
    """Pallas equivalent of the (unfitted) XGBoostClassifier forward pass."""

    def __init__(self, input_size: int, num_classes: int = 2,
                 random_state: int = 42, **kwargs):
        self.input_size = input_size
        self.num_classes = num_classes
        self.random_state = random_state
        self.is_fitted = False          # mirrors the torch module right after __init__
        self._draw = 0
        self._cols = _round_up(max(num_classes, 1), _LANE)
        # Warm the compile cache for the smallest bucket so the first forward()
        # pays no Mosaic compile.
        fn = _build_randn(_MIN_ROWS, self._cols)
        jax.block_until_ready(fn(jnp.asarray([self.random_state & 0x7FFFFFFF], jnp.int32)))
        # TODO(synk): fitted-path XGBoost inference (predict_proba -> clip ->
        # log-odds) is a CPU-library tree-ensemble walk with no clean Pallas
        # equivalent; only the unfitted forward (random logits) is implemented.

    def _next_seed(self) -> int:
        s = (self.random_state * 0x9E3779B1 + self._draw * 0x85EBCA6B) & 0x7FFFFFFF
        self._draw += 1
        return s

    def forward(self, x: jax.Array) -> jax.Array:
        assert x.ndim == 2 and x.shape[1] == self.input_size
        batch = int(x.shape[0])
        rows = max(_MIN_ROWS, pl.next_power_of_2(max(batch, 1)))
        fn = _build_randn(rows, self._cols)                    # cached compiled kernel
        seed = jnp.asarray([self._next_seed()], jnp.int32)     # runtime seed, no recompile
        block = fn(seed)
        return block[:batch, : self.num_classes]

    __call__ = forward


if __name__ == "__main__":
    key = jax.random.PRNGKey(0)
    batch, input_size, num_classes = 2, 32, 2

    # Deterministic example input (values are unused by the unfitted forward,
    # exactly as in the PyTorch module -- only batch_size matters).
    x = jax.random.normal(key, (batch, input_size), dtype=jnp.float32)

    model = XGBoostClassifierPallas(input_size=input_size, num_classes=num_classes)

    logits = jax.block_until_ready(model(x))
    assert logits.shape == (batch, num_classes)
    assert logits.dtype == jnp.float32
    assert bool(jnp.all(jnp.isfinite(logits)))

    # Fresh draw on every call (torch.randn semantics) with no recompilation.
    logits2 = jax.block_until_ready(model(x))
    assert logits2.shape == (batch, num_classes)
    assert bool(jnp.all(jnp.isfinite(logits2)))
    assert not bool(jnp.all(logits == logits2))

    print("KERNEL_OK")
</pallas_src>

<mosaic_0001>
module attributes {stable_mosaic.version = 11 : i64} {
  func.func @_randn_kernel(%arg0: i32, %arg1: memref<1xi32, #tpu.memory_space<smem>>, %arg2: memref<16x128xf32, #tpu.memory_space<vmem>>) attributes {dimension_semantics = [#tpu.dimension_semantics<parallel>], iteration_bounds = array<i64: 1>, scalar_prefetch = 1 : i64, scratch_operands = 0 : i64, tpu.core_type = #tpu.core_type<tc>, window_params = [{transform_indices = @transform_0, window_bounds = array<i64: 16, 128>}]} {
    %0 = tpu.iota {dimensions = array<i32: 0>} : vector<8x128xi32>
    %1 = tpu.iota {dimensions = array<i32: 1>} : vector<8x128xi32>
    %c8_i32 = arith.constant 8 : i32
    %2 = arith.muli %arg0, %c8_i32 : i32
    %3 = vector.broadcast %2 : i32 to vector<8x128xi32>
    %4 = arith.addi %3, %0 : vector<8x128xi32>
    %c128_i32 = arith.constant 128 : i32
    %5 = vector.broadcast %c128_i32 : i32 to vector<8x128xi32>
    %6 = arith.muli %4, %5 : vector<8x128xi32>
    %7 = arith.addi %6, %1 : vector<8x128xi32>
    %c0 = arith.constant 0 : index
    %8 = memref.load %arg1[%c0] : memref<1xi32, #tpu.memory_space<smem>>
    %c-1640531527_i32 = arith.constant -1640531527 : i32
    %9 = arith.muli %8, %c-1640531527_i32 : i32
    %10 = vector.broadcast %9 : i32 to vector<8x128xi32>
    %11 = arith.addi %7, %10 : vector<8x128xi32>
    %c16_i32 = arith.constant 16 : i32
    %12 = vector.broadcast %c16_i32 : i32 to vector<8x128xi32>
    %13 = arith.shrui %11, %12 : vector<8x128xi32>
    %14 = arith.xori %11, %13 : vector<8x128xi32>
    %c2146121005_i32 = arith.constant 2146121005 : i32
    %15 = vector.broadcast %c2146121005_i32 : i32 to vector<8x128xi32>
    %16 = arith.muli %14, %15 : vector<8x128xi32>
    %c15_i32 = arith.constant 15 : i32
    %17 = vector.broadcast %c15_i32 : i32 to vector<8x128xi32>
    %18 = arith.shrui %16, %17 : vector<8x128xi32>
    %19 = arith.xori %16, %18 : vector<8x128xi32>
    %c-2073254261_i32 = arith.constant -2073254261 : i32
    %20 = vector.broadcast %c-2073254261_i32 : i32 to vector<8x128xi32>
    %21 = arith.muli %19, %20 : vector<8x128xi32>
    %c16_i32_0 = arith.constant 16 : i32
    %22 = vector.broadcast %c16_i32_0 : i32 to vector<8x128xi32>
    %23 = arith.shrui %21, %22 : vector<8x128xi32>
    %24 = arith.xori %21, %23 : vector<8x128xi32>
    %c1515870810_i32 = arith.constant 1515870810 : i32
    %25 = vector.broadcast %c1515870810_i32 : i32 to vector<8x128xi32>
    %26 = arith.xori %7, %25 : vector<8x128xi32>
    %27 = vector.broadcast %9 : i32 to vector<8x128xi32>
    %28 = arith.addi %26, %27 : vector<8x128xi32>
    %c16_i32_1 = arith.constant 16 : i32
    %29 = vector.broadcast %c16_i32_1 : i32 to vector<8x128xi32>
    %30 = arith.shrui %28, %29 : vector<8x128xi32>
    %31 = arith.xori %28, %30 : vector<8x128xi32>
    %c2146121005_i32_2 = arith.constant 2146121005 : i32
    %32 = vector.broadcast %c2146121005_i32_2 : i32 to vector<8x128xi32>
    %33 = arith.muli %31, %32 : vector<8x128xi32>
    %c15_i32_3 = arith.constant 15 : i32
    %34 = vector.broadcast %c15_i32_3 : i32 to vector<8x128xi32>
    %35 = arith.shrui %33, %34 : vector<8x128xi32>
    %36 = arith.xori %33, %35 : vector<8x128xi32>
    %c-2073254261_i32_4 = arith.constant -2073254261 : i32
    %37 = vector.broadcast %c-2073254261_i32_4 : i32 to vector<8x128xi32>
    %38 = arith.muli %36, %37 : vector<8x128xi32>
    %c16_i32_5 = arith.constant 16 : i32
    %39 = vector.broadcast %c16_i32_5 : i32 to vector<8x128xi32>
    %40 = arith.shrui %38, %39 : vector<8x128xi32>
    %41 = arith.xori %38, %40 : vector<8x128xi32>
    %c9_i32 = arith.constant 9 : i32
    %42 = vector.broadcast %c9_i32 : i32 to vector<8x128xi32>
    %43 = arith.shrui %24, %42 : vector<8x128xi32>
    %c1065353216_i32 = arith.constant 1065353216 : i32
    %44 = vector.broadcast %c1065353216_i32 : i32 to vector<8x128xi32>
    %45 = arith.ori %43, %44 : vector<8x128xi32>
    %46 = tpu.bitcast %45 : vector<8x128xi32> -> vector<8x128xf32>
    %cst = arith.constant 2.000000e+00 : f32
    %47 = vector.broadcast %cst : f32 to vector<8x128xf32>
    %48 = arith.subf %47, %46 : vector<8x128xf32>
    %c9_i32_6 = arith.constant 9 : i32
    %49 = vector.broadcast %c9_i32_6 : i32 to vector<8x128xi32>
    %50 = arith.shrui %41, %49 : vector<8x128xi32>
    %c1065353216_i32_7 = arith.constant 1065353216 : i32
    %51 = vector.broadcast %c1065353216_i32_7 : i32 to vector<8x128xi32>
    %52 = arith.ori %50, %51 : vector<8x128xi32>
    %53 = tpu.bitcast %52 : vector<8x128xi32> -> vector<8x128xf32>
    %cst_8 = arith.constant 2.000000e+00 : f32
    %54 = vector.broadcast %cst_8 : f32 to vector<8x128xf32>
    %55 = arith.subf %54, %53 : vector<8x128xf32>
    %56 = math.log %48 : vector<8x128xf32>
    %cst_9 = arith.constant -2.000000e+00 : f32
    %57 = vector.broadcast %cst_9 : f32 to vector<8x128xf32>
    %58 = arith.mulf %57, %56 : vector<8x128xf32>
    %59 = math.sqrt %58 : vector<8x128xf32>
    %cst_10 = arith.constant 6.28318548 : f32
    %60 = vector.broadcast %cst_10 : f32 to vector<8x128xf32>
    %61 = arith.mulf %60, %55 : vector<8x128xf32>
    %62 = math.cos %61 : vector<8x128xf32>
    %63 = arith.mulf %59, %62 : vector<8x128xf32>
    %c0_11 = arith.constant 0 : index
    %c0_12 = arith.constant 0 : index
    %64 = vector.load %arg2[%c0_11, %c0_12] : memref<16x128xf32, #tpu.memory_space<vmem>>, vector<8x128xf32>
    tpu.vector_store %arg2[%c0_11, %c0_12], %63 {strides = array<i32>} : memref<16x128xf32, #tpu.memory_space<vmem>>, vector<8x128xf32>,
    %65 = math.sin %61 : vector<8x128xf32>
    %66 = arith.mulf %59, %65 : vector<8x128xf32>
    %c8 = arith.constant 8 : index
    %c0_13 = arith.constant 0 : index
    %67 = vector.load %arg2[%c8, %c0_13] : memref<16x128xf32, #tpu.memory_space<vmem>>, vector<8x128xf32>
    tpu.vector_store %arg2[%c8, %c0_13], %66 {strides = array<i32>} : memref<16x128xf32, #tpu.memory_space<vmem>>, vector<8x128xf32>,
    return
  }
  func.func @transform_0(%arg0: i32, %arg1: memref<1xi32, #tpu.memory_space<smem>>) -> (i32, i32) {
    %c0_i32 = arith.constant 0 : i32
    %c0_i32_0 = arith.constant 0 : i32
    return %arg0, %c0_i32 : i32, i32
  }
}

</mosaic_0001>

<llo_original>
// kernel: tpu_custom_call.1
$region0: #{tpu_custom_call.1}
  #allocation0 [shape = 'u32[]', space=smem, size = 0x4, offset = 0x4, fixed_abs, tag = 'smem constant byte address 0x4 - core index']
  #allocation1 [shape = 'u32[72,128]{1,0:T(1,128)}', space=vmem, size = 0x9000, scoped, tag = 'internal scratch']
  #allocation2 [shape = 's32[1]{0}', space=sflag, size = 0x4, scoped, tag = 'scoped memory for tpu_custom_call.1']
  #allocation3 [shape = 's32[1]{0:T(128)S(6)}', space=smem, size = 0x200, scoped, tag = 'prefetched SMEM operand 0']
  %s0 = inlined_call_operand.<no memory space> [shape: s32[1], index: 0, kind: input, shape index: {}]
  %s1 = inlined_call_operand.hbm [shape: f32[16,128], index: 1, kind: output, shape index: {}]
  %s2 = sld [smem:[#allocation0]]
  $region10: #{tpu_custom_call.1} parent=0
    _
  %s4 = ssub.s32 1, %s2
  %s5 = scalar_select 0, %s4, %s2
  %6 = sst [smem:[#allocation3]] %s0
  $region1: #{tpu_custom_call.1} parent=0
    #allocation4 [shape = 'u8[8192]{0}', space=vmem, size = 0x2000, scoped, tag = 'output window, operand 0, single buffered']
    #allocation5 [shape = 's32[1]{0}', space=sflag, size = 0x4, scoped, tag = 'scoped memory for tpu_custom_call.1']
    %7 = vsyncpa [#allocation5], 0
    %v8 = vlaneseq
    %v9 = vshrl.u32 %v8, 7
    %v10 = vlaneseq
    %v11 = vand.u32 %v10, 127
    %s12 = smul.u32 0, 8
    %v13 = vstv %s12
    %v14 = vadd.s32 %v13, %v9
    %v15 = vmul.u32 %v14, 128
    %v16 = vadd.s32 %v15, %v11
    %s17 = sld [smem:[#allocation3]]
    %s18 = smul.u32 %s17, 2654435769
    %v19 = vstv %s18
    %v20 = vadd.s32 %v16, %v19
    %v21 = vshrl.u32 %v20, 16
    %v22 = vxor.u32 %v20, %v21
    %v23 = vmul.u32 %v22, 2146121005
    %v24 = vshrl.u32 %v23, 15
    %v25 = vxor.u32 %v23, %v24
    %v26 = vmul.u32 %v25, 2221713035
    %v27 = vshrl.u32 %v26, 16
    %v28 = vxor.u32 %v26, %v27
    %v29 = vxor.u32 %v16, 1515870810
    %v30 = vadd.s32 %v29, %v19
    %v31 = vshrl.u32 %v30, 16
    %v32 = vxor.u32 %v30, %v31
    %v33 = vmul.u32 %v32, 2146121005
    %v34 = vshrl.u32 %v33, 15
    %v35 = vxor.u32 %v33, %v34
    %v36 = vmul.u32 %v35, 2221713035
    %v37 = vshrl.u32 %v36, 16
    %v38 = vxor.u32 %v36, %v37
    %v39 = vshrl.u32 %v28, 9
    %v40 = vor.u32 %v39, 1065353216
    %v42 = vsub.f32 2.0, %v40
    %v43 = vshrl.u32 %v38, 9
    %v44 = vor.u32 %v43, 1065353216
    %v46 = vsub.f32 2.0, %v44
    %v47 = vlog2.pop %v42
    %v48 = vmul.f32 %v47, 0.6931472
    %v49 = vmul.f32 %v48, -2.0
    %v50 = vrsqrt.pop %v49
    %v51 = vmul.f32 %v50, %v49
    %v52 = vmul.f32 %v51, %v50
    %v53 = vmul.f32 0.5, %v52
    %v54 = vsub.f32 1.5, %v53
    %v55 = vmul.f32 %v50, %v54
    %v56 = vmul.f32 %v49, %v55
    %vm57 = vcmp.eq.f32.partialorder %v49, inf
    %v58 = vsel %vm57, %v49, %v56
    %vm59 = vcmp.eq.f32.partialorder %v49, 0.0
    %v60 = vand.u32 %v49, 2147483648
    %v61 = vsel %vm59, %v60, %v58
    %v62 = vmul.f32 %v46, 6.2831855
    %v63 = vand.u32 2147483647, %v62
    %vm64 = vcmp.le.f32.partialorder %v63, 0.7853982
    %vm65 = vcmp.lt.s32.totalorder %v62, 0
    %v66 = vand.u32 %v62, 2139095040
    %v67 = vshrl.u32 %v66, 23
    %v68 = vsub.s32 %v67, 127
    %v69 = vand.u32 2147483647, %v62
    %v70 = vand.u32 %v69, 8388607
    %v71 = vor.u32 %v70, 8388608
    %v72 = vsub.s32 0, %v71
    %v73 = vadd.s32 %v68, 1
    %vm74 = vcmp.gt.s32.totalorder %v73, 0
    %v75 = vsel %vm74, %v73, 0
    %v76 = vshrl.u32 %v75, 5
    %v77 = vand.u32 %v75, 31
    %v78 = vsub.s32 32, %v77
    %v79 = vshrl.u32 683565275, %v78
    %v80 = vshll.u32 683565275, %v77
    %v81 = vshrl.u32 2475754826, %v78
    %v82 = vor.u32 %v80, %v81
    %v83 = vshll.u32 2475754826, %v77
    %v84 = vshrl.u32 2131351028, %v78
    %v85 = vor.u32 %v83, %v84
    %v86 = vshll.u32 2131351028, %v77
    %v87 = vshrl.u32 2102212464, %v78
    %v88 = vor.u32 %v86, %v87
    %v89 = vshll.u32 2102212464, %v77
    %v90 = vshrl.u32 920167782, %v78
    %v91 = vor.u32 %v89, %v90
    %v92 = vshll.u32 920167782, %v77
    %v93 = vshrl.u32 1326507024, %v78
    %v94 = vor.u32 %v92, %v93
    %vm95 = vcmp.lt.s32.totalorder %v76, 1
    %vm96 = vcmp.lt.s32.totalorder %v76, 2
    %vm97 = vcmp.lt.s32.totalorder %v76, 3
    %vm98 = vcmp.lt.s32.totalorder %v76, 4
    %v99 = vsel %vm95, %v79, %v82
    %v100 = vsel %vm98, %v88, 2102212464
    %v101 = vsel %vm97, %v85, %v100
    %v102 = vsel %vm96, %v99, %v101
    %v103 = vsel %vm95, %v82, %v85
    %v104 = vsel %vm98, %v91, 920167782
    %v105 = vsel %vm97, %v88, %v104
    %v106 = vsel %vm96, %v103, %v105
    %v107 = vsel %vm95, %v85, %v88
    %v108 = vsel %vm98, %v94, 1326507024
    %v109 = vsel %vm97, %v91, %v108
    %v110 = vsel %vm96, %v107, %v109
    %v111 = vshll.u32 %v71, 8
    %v112 = vand.u32 %v111, 65535
    %v113 = vshrl.u32 %v111, 16
    %v114 = vand.u32 %v110, 65535
    %v115 = vshrl.u32 %v110, 16
    %v116 = vmul.u32 %v112, %v114
    %v117 = vmul.u32 %v112, %v115
    %v118 = vmul.u32 %v113, %v114
    %v119 = vmul.u32 %v113, %v115
    %v120 = vshll.u32 %v117, 16
    %v121 = vshrl.u32 %v117, 16
    %v122 = vshll.u32 %v118, 16
    %v123 = vshrl.u32 %v118, 16
    %vm124 = vc.u32 %v116, %v120
    %v125 = vsel %vm124, 1, 0
    %v126 = vadd.s32 %v116, %v120
    %v127 = vadd.s32 %v119, %v125
    %vm128 = vc.u32 %v126, %v122
    %v129 = vsel %vm128, 1, 0
    %v130 = vadd.s32 %v126, %v122
    %v131 = vadd.s32 %v127, %v129
    %v132 = vadd.s32 %v131, %v121
    %v133 = vadd.s32 %v132, %v123
    %v134 = vand.u32 %v111, 65535
    %v135 = vshrl.u32 %v111, 16
    %v136 = vand.u32 %v106, 65535
    %v137 = vshrl.u32 %v106, 16
    %v138 = vmul.u32 %v134, %v136
    %v139 = vmul.u32 %v134, %v137
    %v140 = vmul.u32 %v135, %v136
    %v141 = vmul.u32 %v135, %v137
    %v142 = vshll.u32 %v139, 16
    %v143 = vshrl.u32 %v139, 16
    %v144 = vshll.u32 %v140, 16
    %v145 = vshrl.u32 %v140, 16
    %vm146 = vc.u32 %v138, %v142
    %v147 = vsel %vm146, 1, 0
    %v148 = vadd.s32 %v138, %v142
    %v149 = vadd.s32 %v141, %v147
    %vm150 = vc.u32 %v148, %v144
    %v151 = vsel %vm150, 1, 0
    %v152 = vadd.s32 %v148, %v144
    %v153 = vadd.s32 %v149, %v151
    %v154 = vadd.s32 %v153, %v143
    %v155 = vadd.s32 %v154, %v145
    %v156 = vmul.u32 %v111, %v102
    %v157 = vadd.s32 %v133, %v152
    %vm158 = vc.u32 %v133, %v152
    %v159 = vadd.s32 %v155, 1
    %v160 = vsel %vm158, %v159, %v155
    %v161 = vadd.s32 %v156, %v160
    %v162 = vadd.s32 %v161, 536870912
    %v163 = vshrl.u32 %v162, 30
    %v164 = vshll.u32 %v163, 30
    %v165 = vsub.s32 %v161, %v164
    %vm166 = vcmp.lt.s32.totalorder %v165, 0
    %v167 = vsub.s32 0, %v165
    %v168 = vsel %vm166, %v167, %v165
    %v169 = vclz %v168
    %v170 = vsub.s32 %v169, 2
    %vm171 = vcmp.gt.s32.totalorder 0, %v170
    %v172 = vsel %vm171, 0, %v170
    %v173 = vsub.s32 32, %v172
    %v174 = vshll.u32 %v165, %v172
    %v175 = vshrl.u32 %v157, %v173
    %v176 = vor.u32 %v174, %v175
    %v177 = vsub.s32 4294967266, %v172
    %v178 = vadd.s32 %v177, 127
    %v179 = vshll.u32 %v178, 23
    %v180 = vor.u32 4788187, %v179
    %v181 = vand.u32 2147483647, %v180
    %v183 = vcvt.s32.f32 %v176
    %v184 = vmul.f32 %v183, %v181
    %v185 = vxor.u32 %v184, 2147483648
    %v186 = vsel %vm65, %v185, %v184
    %v187 = vsub.s32 4, %v163
    %v188 = vsel %vm65, %v187, %v163
    %v189 = vsel %vm64, %v62, %v186
    %v190 = vsel %vm64, 0, %v188
    %v191 = vmul.f32 %v189, %v189
    %v192 = vmul.f32 %v191, -0.001358992
    %v193 = vadd.f32 %v192, 0.041655596
    %v194 = vmul.f32 %v191, %v193
    %v195 = vadd.f32 %v194, -0.4999988
    %v196 = vmul.f32 %v191, %v195
    %v197 = vadd.f32 1.0, %v196
    %v198 = vmul.f32 %v189, %v189
    %v199 = vmul.f32 %v198, -0.00019511016
    %v200 = vadd.f32 %v199, 0.008332121
    %v201 = vmul.f32 %v198, %v200
    %v202 = vadd.f32 %v201, -0.16666654
    %v203 = vmul.f32 %v198, %v202
    %v204 = vadd.f32 %v203, 1.0
    %v205 = vmul.f32 %v204, %v189
    %vm206 = vweird.f32 %v62
    %v207 = vand.u32 %v190, 3
    %vm208 = vcmp.lt.s32.totalorder %v207, 2
    %vm209 = vcmp.eq.s32.totalorder %v207, 0
    %v210 = vxor.u32 %v205, 2147483648
    %v211 = vsel %vm209, %v197, %v210
    %vm212 = vcmp.eq.s32.totalorder %v207, 2
    %v213 = vxor.u32 %v197, 2147483648
    %v214 = vsel %vm212, %v213, %v205
    %v215 = vsel %vm208, %v211, %v214
    %v216 = vsel %vm206, nan, %v215
    %v217 = vmul.f32 %v61, %v216
    %218 = vst [vmem:[#allocation4] sm:$0xff] %v217
    %v219 = vand.u32 2147483647, %v62
    %vm220 = vcmp.le.f32.partialorder %v219, 0.7853982
    %vm221 = vcmp.lt.s32.totalorder %v62, 0
    %v222 = vand.u32 %v62, 2139095040
    %v223 = vshrl.u32 %v222, 23
    %v224 = vsub.s32 %v223, 127
    %v225 = vand.u32 2147483647, %v62
    %v226 = vand.u32 %v225, 8388607
    %v227 = vor.u32 %v226, 8388608
    %v228 = vsub.s32 0, %v227
    %v229 = vadd.s32 %v224, 1
    %vm230 = vcmp.gt.s32.totalorder %v229, 0
    %v231 = vsel %vm230, %v229, 0
    %v232 = vshrl.u32 %v231, 5
    %v233 = vand.u32 %v231, 31
    %v234 = vsub.s32 32, %v233
    %v235 = vshrl.u32 683565275, %v234
    %v236 = vshll.u32 683565275, %v233
    %v237 = vshrl.u32 2475754826, %v234
    %v238 = vor.u32 %v236, %v237
    %v239 = vshll.u32 2475754826, %v233
    %v240 = vshrl.u32 2131351028, %v234
    %v241 = vor.u32 %v239, %v240
    %v242 = vshll.u32 2131351028, %v233
    %v243 = vshrl.u32 2102212464, %v234
    %v244 = vor.u32 %v242, %v243
    %v245 = vshll.u32 2102212464, %v233
    %v246 = vshrl.u32 920167782, %v234
    %v247 = vor.u32 %v245, %v246
    %v248 = vshll.u32 920167782, %v233
    %v249 = vshrl.u32 1326507024, %v234
    %v250 = vor.u32 %v248, %v249
    %vm251 = vcmp.lt.s32.totalorder %v232, 1
    %vm252 = vcmp.lt.s32.totalorder %v232, 2
    %vm253 = vcmp.lt.s32.totalorder %v232, 3
    %vm254 = vcmp.lt.s32.totalorder %v232, 4
    %v255 = vsel %vm251, %v235, %v238
    %v256 = vsel %vm254, %v244, 2102212464
    %v257 = vsel %vm253, %v241, %v256
    %v258 = vsel %vm252, %v255, %v257
    %v259 = vsel %vm251, %v238, %v241
    %v260 = vsel %vm254, %v247, 920167782
    %v261 = vsel %vm253, %v244, %v260
    %v262 = vsel %vm252, %v259, %v261
    %v263 = vsel %vm251, %v241, %v244
    %v264 = vsel %vm254, %v250, 1326507024
    %v265 = vsel %vm253, %v247, %v264
    %v266 = vsel %vm252, %v263, %v265
    %v267 = vshll.u32 %v227, 8
    %v268 = vand.u32 %v267, 65535
    %v269 = vshrl.u32 %v267, 16
    %v270 = vand.u32 %v266, 65535
    %v271 = vshrl.u32 %v266, 16
    %v272 = vmul.u32 %v268, %v270
    %v273 = vmul.u32 %v268, %v271
    %v274 = vmul.u32 %v269, %v270
    %v275 = vmul.u32 %v269, %v271
    %v276 = vshll.u32 %v273, 16
    %v277 = vshrl.u32 %v273, 16
    %v278 = vshll.u32 %v274, 16
    %v279 = vshrl.u32 %v274, 16
    %vm280 = vc.u32 %v272, %v276
    %v281 = vsel %vm280, 1, 0
    %v282 = vadd.s32 %v272, %v276
    %v283 = vadd.s32 %v275, %v281
    %vm284 = vc.u32 %v282, %v278
    %v285 = vsel %vm284, 1, 0
    %v286 = vadd.s32 %v282, %v278
    %v287 = vadd.s32 %v283, %v285
    %v288 = vadd.s32 %v287, %v277
    %v289 = vadd.s32 %v288, %v279
    %v290 = vand.u32 %v267, 65535
    %v291 = vshrl.u32 %v267, 16
    %v292 = vand.u32 %v262, 65535
    %v293 = vshrl.u32 %v262, 16
    %v294 = vmul.u32 %v290, %v292
    %v295 = vmul.u32 %v290, %v293
    %v296 = vmul.u32 %v291, %v292
    %v297 = vmul.u32 %v291, %v293
    %v298 = vshll.u32 %v295, 16
    %v299 = vshrl.u32 %v295, 16
    %v300 = vshll.u32 %v296, 16
    %v301 = vshrl.u32 %v296, 16
    %vm302 = vc.u32 %v294, %v298
    %v303 = vsel %vm302, 1, 0
    %v304 = vadd.s32 %v294, %v298
    %v305 = vadd.s32 %v297, %v303
    %vm306 = vc.u32 %v304, %v300
    %v307 = vsel %vm306, 1, 0
    %v308 = vadd.s32 %v304, %v300
    %v309 = vadd.s32 %v305, %v307
    %v310 = vadd.s32 %v309, %v299
    %v311 = vadd.s32 %v310, %v301
    %v312 = vmul.u32 %v267, %v258
    %v313 = vadd.s32 %v289, %v308
    %vm314 = vc.u32 %v289, %v308
    %v315 = vadd.s32 %v311, 1
    %v316 = vsel %vm314, %v315, %v311
    %v317 = vadd.s32 %v312, %v316
    %v318 = vadd.s32 %v317, 536870912
    %v319 = vshrl.u32 %v318, 30
    %v320 = vshll.u32 %v319, 30
    %v321 = vsub.s32 %v317, %v320
    %vm322 = vcmp.lt.s32.totalorder %v321, 0
    %v323 = vsub.s32 0, %v321
    %v324 = vsel %vm322, %v323, %v321
    %v325 = vclz %v324
    %v326 = vsub.s32 %v325, 2
    %vm327 = vcmp.gt.s32.totalorder 0, %v326
    %v328 = vsel %vm327, 0, %v326
    %v329 = vsub.s32 32, %v328
    %v330 = vshll.u32 %v321, %v328
    %v331 = vshrl.u32 %v313, %v329
    %v332 = vor.u32 %v330, %v331
    %v333 = vsub.s32 4294967266, %v328
    %v334 = vadd.s32 %v333, 127
    %v335 = vshll.u32 %v334, 23
    %v336 = vor.u32 4788187, %v335
    %v337 = vand.u32 2147483647, %v336
    %v339 = vcvt.s32.f32 %v332
    %v340 = vmul.f32 %v339, %v337
    %v341 = vxor.u32 %v340, 2147483648
    %v342 = vsel %vm221, %v341, %v340
    %v343 = vsub.s32 4, %v319
    %v344 = vsel %vm221, %v343, %v319
    %v345 = vsel %vm220, %v62, %v342
    %v346 = vsel %vm220, 0, %v344
    %v347 = vmul.f32 %v345, %v345
    %v348 = vmul.f32 %v347, -0.001358992
    %v349 = vadd.f32 %v348, 0.041655596
    %v350 = vmul.f32 %v347, %v349
    %v351 = vadd.f32 %v350, -0.4999988
    %v352 = vmul.f32 %v347, %v351
    %v353 = vadd.f32 1.0, %v352
    %v354 = vmul.f32 %v345, %v345
    %v355 = vmul.f32 %v354, -0.00019511016
    %v356 = vadd.f32 %v355, 0.008332121
    %v357 = vmul.f32 %v354, %v356
    %v358 = vadd.f32 %v357, -0.16666654
    %v359 = vmul.f32 %v354, %v358
    %v360 = vadd.f32 %v359, 1.0
    %v361 = vmul.f32 %v360, %v345
    %vm362 = vweird.f32 %v62
    %v363 = vadd.s32 %v346, 3
    %v364 = vand.u32 %v363, 3
    %vm365 = vcmp.lt.s32.totalorder %v364, 2
    %vm366 = vcmp.eq.s32.totalorder %v364, 0
    %v367 = vxor.u32 %v361, 2147483648
    %v368 = vsel %vm366, %v353, %v367
    %vm369 = vcmp.eq.s32.totalorder %v364, 2
    %v370 = vxor.u32 %v353, 2147483648
    %v371 = vsel %vm369, %v370, %v361
    %v372 = vsel %vm365, %v368, %v371
    %v373 = vsel %vm362, nan, %v372
    %v374 = vmul.f32 %v61, %v373
    %375 = vst [vmem:[#allocation4 + $0x8] sm:$0xff] %v374
    // Predicated region
    $region2: #{tpu_custom_call.1} parent=1 // pred_check
      _
    $region3: #{tpu_custom_call.1} parent=1 // pred_check_branch
      %377 = sbr.rel (0) target = $region5
    $region4: #{tpu_custom_call.1} parent=1 // pred_region
      %379 = vsyncadd [#allocation5], 0
      %s380 = sshll.u32 [#allocation4], 4
      %s381 = int_to_ptr.vmem [resolvable:$true] %s380
      %s382 = sshll.u32 %s1, 4
      %s383 = int_to_ptr.hbm [resolvable:$true] %s382
      %388 = dma.vmem_to_hbm [thread:$0]  %s381, 256, %s383, [#allocation5], 128, 128, 8
    $region5: #{tpu_custom_call.1} parent=1 // pred_fallthru
      _
    // Predicated region
    $region6: #{tpu_custom_call.1} parent=1 // pred_check
      _
    $region7: #{tpu_custom_call.1} parent=1 // pred_check_branch
      %390 = sbr.rel (0) target = $region9
    $region8: #{tpu_custom_call.1} parent=1 // pred_region
      %392 = dma.done [#allocation5], 256
    $region9: #{tpu_custom_call.1} parent=1 // pred_fallthru
      _
    %393 = vsyncpa [#allocation5], 1

</llo_original>
